<compile_context>
chip_gen: v5e
topology: v5e:2x2
jax: 0.10.0
libtpu: 0.0.40
codegen_flags: <defaults>
</compile_context>

<pallas_src>
import math

import jax
import jax.numpy as jnp
from jax import lax
from jax.experimental import pallas as pl
from jax.experimental.pallas import tpu as pltpu


def _round_up(x: int, m: int) -> int:
    return ((x + m - 1) // m) * m


def tsk_kernel(x_ref, w_ref, b_ref, o_ref):
    # x_ref: (TB, n_rules)
    # w_ref: (n_out_padded, n_rules)   -- PyTorch Linear layout, no transpose
    # b_ref: (1, n_out_padded)
    # o_ref: (TB, n_out_padded)        -- lane-dense (multiple of 128)
    y = lax.dot_general(
        x_ref[...],
        w_ref[...],
        dimension_numbers=(((1,), (1,)), ((), ())),   # contract rule axes
        preferred_element_type=jnp.float32,
    )
    o_ref[...] = (y + b_ref[...]).astype(o_ref.dtype)


def tsk_forward(degrees, weight, bias, *, block_batch=512):
    """TSK defuzzification.

    Args:
      degrees: (batch, n_rules, 1) rule activations (Membership.degrees).
      weight:  (n_outputs, n_rules) Linear weight (PyTorch convention).
      bias:    (n_outputs,) Linear bias.
      block_batch: target batch tile size (rounded to a sublane multiple).

    Returns:
      (batch, n_outputs) defuzzified outputs.
    """
    x = jnp.squeeze(degrees, axis=-1)              # (batch, n_rules)
    batch, n_rules = x.shape
    n_outputs = weight.shape[0]

    # Lane-dense output dimension: pad n_outputs up to a multiple of 128.
    n_out_p = _round_up(n_outputs, 128)

    # Batch tiling: TB is a multiple of 8 (sublane), batch padded to TB.
    tb = min(_round_up(max(block_batch, 8), 8), _round_up(batch, 8))
    batch_p = _round_up(batch, tb)

    if batch_p != batch:
        x = jnp.pad(x, ((0, batch_p - batch), (0, 0)))
    w_p = jnp.pad(weight, ((0, n_out_p - n_outputs), (0, 0)))      # (N_p, K)
    b_p = jnp.pad(bias, (0, n_out_p - n_outputs)).reshape(1, n_out_p)

    out_p = pl.pallas_call(
        tsk_kernel,
        out_shape=jax.ShapeDtypeStruct((batch_p, n_out_p), x.dtype),
        grid_spec=pltpu.PrefetchScalarGridSpec(
            num_scalar_prefetch=0,
            grid=(batch_p // tb,),
            in_specs=[
                # x streams per batch tile.
                pl.BlockSpec((tb, n_rules), lambda i: (i, 0)),
                # Weight / bias stay VMEM-resident (same block for every i).
                pl.BlockSpec((n_out_p, n_rules), lambda i: (0, 0)),
                pl.BlockSpec((1, n_out_p), lambda i: (0, 0)),
            ],
            out_specs=pl.BlockSpec((tb, n_out_p), lambda i: (i, 0)),
        ),
        compiler_params=pltpu.CompilerParams(
            dimension_semantics=("parallel",),
        ),
    )(x, w_p, b_p)

    # Strip batch and output padding.
    return out_p[:batch, :n_outputs]


if __name__ == "__main__":
    # Small shapes implied by the module: Shape.n_rules, Shape.n_outputs.
    batch = 200
    n_rules = 32
    n_outputs = 16

    key = jax.random.PRNGKey(0)
    k_deg, k_w, k_b = jax.random.split(key, 3)

    # Rule activations (firing levels) in [0, 1], shape (batch, n_rules, 1).
    degrees = jax.random.uniform(k_deg, (batch, n_rules, 1), dtype=jnp.float32)

    # Deterministic Linear(n_rules, n_outputs) params (PyTorch default init:
    # uniform(-1/sqrt(in_features), 1/sqrt(in_features))).
    bound = 1.0 / math.sqrt(n_rules)
    weight = jax.random.uniform(
        k_w, (n_outputs, n_rules), dtype=jnp.float32, minval=-bound, maxval=bound
    )
    bias = jax.random.uniform(
        k_b, (n_outputs,), dtype=jnp.float32, minval=-bound, maxval=bound
    )

    # block_batch=64 so the small demo still exercises multi-tile batch
    # streaming (grid=(4,)) and batch padding (200 -> 256).
    out = tsk_forward(degrees, weight, bias, block_batch=64)
    out = jax.block_until_ready(out)

    # Reference check in plain JAX.
    ref = jnp.squeeze(degrees, -1) @ weight.T + bias
    assert out.shape == (batch, n_outputs)
    assert jnp.allclose(out, ref, atol=1e-5, rtol=1e-5)

    print("KERNEL_OK")
</pallas_src>

<mosaic_0001>
module attributes {stable_mosaic.version = 11 : i64} {
  func.func @tsk_kernel(%arg0: i32, %arg1: memref<64x32xf32, #tpu.memory_space<vmem>>, %arg2: memref<128x32xf32, #tpu.memory_space<vmem>>, %arg3: memref<1x128xf32, #tpu.memory_space<vmem>>, %arg4: memref<64x128xf32, #tpu.memory_space<vmem>>) attributes {dimension_semantics = [#tpu.dimension_semantics<parallel>], iteration_bounds = array<i64: 4>, scalar_prefetch = 0 : i64, scratch_operands = 0 : i64, tpu.core_type = #tpu.core_type<tc>, window_params = [{transform_indices = @transform_0, window_bounds = array<i64: 64, 32>}, {pipeline_mode = #tpu.pipeline_mode<synchronous>, transform_indices = @transform_1, window_bounds = array<i64: 128, 32>}, {pipeline_mode = #tpu.pipeline_mode<synchronous>, transform_indices = @transform_2, window_bounds = array<i64: 1, 128>}, {transform_indices = @transform_3, window_bounds = array<i64: 64, 128>}]} {
    %c0 = arith.constant 0 : index
    %c0_0 = arith.constant 0 : index
    %0 = vector.load %arg1[%c0, %c0_0] : memref<64x32xf32, #tpu.memory_space<vmem>>, vector<64x32xf32>
    %c0_1 = arith.constant 0 : index
    %c0_2 = arith.constant 0 : index
    %1 = vector.load %arg2[%c0_1, %c0_2] : memref<128x32xf32, #tpu.memory_space<vmem>>, vector<128x32xf32>
    %cst = arith.constant dense<0.000000e+00> : vector<64x128xf32>
    %2 = tpu.matmul %0, %1, %cst {dimension_numbers = #tpu.dot_dimension_numbers<[1], [1], [0], [0], [0, 0, 1, 0], [], []>} : vector<64x32xf32>, vector<128x32xf32>, vector<64x128xf32> -> vector<64x128xf32>
    %c0_3 = arith.constant 0 : index
    %c0_4 = arith.constant 0 : index
    %3 = vector.load %arg3[%c0_3, %c0_4] : memref<1x128xf32, #tpu.memory_space<vmem>>, vector<1x128xf32>
    %4 = vector.broadcast %3 : vector<1x128xf32> to vector<64x128xf32>
    %5 = arith.addf %2, %4 : vector<64x128xf32>
    %c0_5 = arith.constant 0 : index
    %c0_6 = arith.constant 0 : index
    %6 = vector.load %arg4[%c0_5, %c0_6] : memref<64x128xf32, #tpu.memory_space<vmem>>, vector<64x128xf32>
    tpu.vector_store %arg4[%c0_5, %c0_6], %5 {strides = array<i32>} : memref<64x128xf32, #tpu.memory_space<vmem>>, vector<64x128xf32>,
    return
  }
  func.func @transform_0(%arg0: i32) -> (i32, i32) {
    %c0_i32 = arith.constant 0 : i32
    %c0_i32_0 = arith.constant 0 : i32
    return %arg0, %c0_i32 : i32, i32
  }
  func.func @transform_1(%arg0: i32) -> (i32, i32) {
    %c0_i32 = arith.constant 0 : i32
    %c0_i32_0 = arith.constant 0 : i32
    %c0_i32_1 = arith.constant 0 : i32
    return %c0_i32, %c0_i32_0 : i32, i32
  }
  func.func @transform_2(%arg0: i32) -> (i32, i32) {
    %c0_i32 = arith.constant 0 : i32
    %c0_i32_0 = arith.constant 0 : i32
    %c0_i32_1 = arith.constant 0 : i32
    return %c0_i32, %c0_i32_0 : i32, i32
  }
  func.func @transform_3(%arg0: i32) -> (i32, i32) {
    %c0_i32 = arith.constant 0 : i32
    %c0_i32_0 = arith.constant 0 : i32
    return %arg0, %c0_i32 : i32, i32
  }
}

</mosaic_0001>

<llo_original>
// kernel: tpu_custom_call.1
$region0: #{tpu_custom_call.1}
  #allocation0 [shape = 'u32[]', space=smem, size = 0x4, offset = 0x4, fixed_abs, tag = 'smem constant byte address 0x4 - core index']
  #allocation1 [shape = 'u32[72,128]{1,0:T(1,128)}', space=vmem, size = 0x9000, scoped, tag = 'internal scratch']
  %s0 = inlined_call_operand.vmem [shape: f32[256,32], index: 0, kind: input, shape index: {}]
  %s1 = inlined_call_operand.vmem [shape: f32[128,32], index: 1, kind: input, shape index: {}]
  %s2 = inlined_call_operand.vmem [shape: f32[1,128], index: 2, kind: input, shape index: {}]
  %s3 = inlined_call_operand.hbm [shape: f32[256,128], index: 3, kind: output, shape index: {}]
  %s4 = sld [smem:[#allocation0]]
  $region45: #{tpu_custom_call.1} parent=0
    _
  %s6 = ssub.s32 1, %s4
  %s7 = scalar_select 0, %s6, %s4
  $region1: #{tpu_custom_call.1} parent=0
    #allocation2 [shape = 'u8[65536]{0}', space=vmem, size = 0x10000, scoped, tag = 'output window, operand 0']
    #allocation3 [shape = 's32[2]{0}', space=sflag, size = 0x8, scoped, tag = 'scoped memory for tpu_custom_call.1']
    %8 = vsyncpa [#allocation3], 0
    %s9 = scalar_lea.sflag [#allocation3], 1
    %10 = vsyncpa %s9, 0
    loop: start=0, step=1, limit=6
    $region2: #{tpu_custom_call.1} parent=1 // loop_pre_header
      _
    $region3: #{tpu_custom_call.1} parent=1 // loop_header
      %s12 = sphi 0, %s16
      %p13 = scmp.ge.s32.totalorder %s12, 6
      %s22 = sphi 0, %s24
      %s25 = sphi 0, %s22
      %s26 = sphi 0, %s25
      %s42 = sphi 0, %s26
      %s46 = sphi 0, %s46
      %s48 = sphi 0, %s46
      %s49 = sphi 0, %s48
      %s63 = sphi 0, %s49
      %s67 = sphi 0, %s67
      %s69 = sphi 0, %s67
      %s70 = sphi 0, %s69
      %s84 = sphi 0, %s70
      %s90 = sphi 0, %s92
      %s93 = sphi 0, %s90
      %s94 = sphi 0, %s93
      %s110 = sphi 0, %s94
    $region4: #{tpu_custom_call.1} parent=1 // loop_header_branch
      %15 = sbr.rel (%p13) target = $region8
    $region5: #{tpu_custom_call.1} parent=1 // loop_body
      %s17 = ssub.s32 %s12, 1
      %s18 = ssub.s32 %s12, 2
      %s19 = sadd.s32 %s12, 1
      %s20 = ssub.s32 %s12, %s19
      %p21 = scmp.eq.s32.totalorder %s20, 0
      %s23 = sadd.s32 %s22, 1
      %s24 = scalar_select %p21, %s22, %s23
      %p27 = pneg %p21
      %p28 = scmp.eq.s32.totalorder %s12, 3
      %p29 = por %p27, %p28
      %p30 = scmp.ne.s32.totalorder %s22, %s25
      %p31 = scmp.eq.s32.totalorder %s12, 0
      %p32 = por %p30, %p31
      %p33 = scmp.ne.s32.totalorder %s22, %s25
      %p34 = scmp.eq.s32.totalorder %s17, 3
      %p35 = por %p33, %p34
      %p36 = scmp.ne.s32.totalorder %s25, %s26
      %p37 = scmp.eq.s32.totalorder %s17, 0
      %p38 = por %p36, %p37
      %p39 = scmp.ne.s32.totalorder %s25, %s26
      %p40 = scmp.eq.s32.totalorder %s18, 3
      %p41 = por %p39, %p40
      %p43 = scmp.ne.s32.totalorder %s26, %s42
      %p44 = scmp.eq.s32.totalorder %s18, 0
      %p45 = por %p43, %p44
      %s47 = sadd.s32 %s46, 1
      %p50 = scmp.eq.s32.totalorder %s12, 3
      %p51 = scmp.ne.s32.totalorder %s46, %s48
      %p52 = scmp.eq.s32.totalorder %s12, 0
      %p53 = por %p51, %p52
      %p54 = scmp.ne.s32.totalorder %s46, %s48
      %p55 = scmp.eq.s32.totalorder %s17, 3
      %p56 = por %p54, %p55
      %p57 = scmp.ne.s32.totalorder %s48, %s49
      %p58 = scmp.eq.s32.totalorder %s17, 0
      %p59 = por %p57, %p58
      %p60 = scmp.ne.s32.totalorder %s48, %s49
      %p61 = scmp.eq.s32.totalorder %s18, 3
      %p62 = por %p60, %p61
      %p64 = scmp.ne.s32.totalorder %s49, %s63
      %p65 = scmp.eq.s32.totalorder %s18, 0
      %p66 = por %p64, %p65
      %s68 = sadd.s32 %s67, 1
      %p71 = scmp.eq.s32.totalorder %s12, 3
      %p72 = scmp.ne.s32.totalorder %s67, %s69
      %p73 = scmp.eq.s32.totalorder %s12, 0
      %p74 = por %p72, %p73
      %p75 = scmp.ne.s32.totalorder %s67, %s69
      %p76 = scmp.eq.s32.totalorder %s17, 3
      %p77 = por %p75, %p76
      %p78 = scmp.ne.s32.totalorder %s69, %s70
      %p79 = scmp.eq.s32.totalorder %s17, 0
      %p80 = por %p78, %p79
      %p81 = scmp.ne.s32.totalorder %s69, %s70
      %p82 = scmp.eq.s32.totalorder %s18, 3
      %p83 = por %p81, %p82
      %p85 = scmp.ne.s32.totalorder %s70, %s84
      %p86 = scmp.eq.s32.totalorder %s18, 0
      %p87 = por %p85, %p86
      %s88 = ssub.s32 %s12, %s19
      %p89 = scmp.eq.s32.totalorder %s88, 0
      %s91 = sadd.s32 %s90, 1
      %s92 = scalar_select %p89, %s90, %s91
      %p95 = pneg %p89
      %p96 = scmp.eq.s32.totalorder %s12, 3
      %p97 = por %p95, %p96
      %p98 = scmp.ne.s32.totalorder %s90, %s93
      %p99 = scmp.eq.s32.totalorder %s12, 0
      %p100 = por %p98, %p99
      %p101 = scmp.ne.s32.totalorder %s90, %s93
      %p102 = scmp.eq.s32.totalorder %s17, 3
      %p103 = por %p101, %p102
      %p104 = scmp.ne.s32.totalorder %s93, %s94
      %p105 = scmp.eq.s32.totalorder %s17, 0
      %p106 = por %p104, %p105
      %p107 = scmp.ne.s32.totalorder %s93, %s94
      %p108 = scmp.eq.s32.totalorder %s18, 3
      %p109 = por %p107, %p108
      %p111 = scmp.ne.s32.totalorder %s94, %s110
      %p112 = scmp.eq.s32.totalorder %s18, 0
      %p113 = por %p111, %p112
      %p114 = scmp.le.s32.totalorder 1, %s12
      %p115 = scmp.lt.s32.totalorder %s12, 5
      %p116 = pnand %p114, %p115
      %p117 = pneg %p116
      // Predicated region
      $region9: #{tpu_custom_call.1} parent=5 // pred_check
        _
      $region10: #{tpu_custom_call.1} parent=5 // pred_check_branch
        %119 = sbr.rel (%p116) target = $region12
      $region11: #{tpu_custom_call.1} parent=5 // pred_region
        %s120 = ssub.s32 %s12, 1
        // Predicated region
        $region13: #{tpu_custom_call.1} parent=11 // pred_check
          %p121 = pneg %p59
        $region14: #{tpu_custom_call.1} parent=11 // pred_check_branch
          %123 = sbr.rel (%p121) target = $region16
        $region15: #{tpu_custom_call.1} parent=11 // pred_region
          _
        $region16: #{tpu_custom_call.1} parent=11 // pred_fallthru
          _
        // Predicated region
        $region17: #{tpu_custom_call.1} parent=11 // pred_check
          %p124 = pneg %p80
        $region18: #{tpu_custom_call.1} parent=11 // pred_check_branch
          %126 = sbr.rel (%p124) target = $region20
        $region19: #{tpu_custom_call.1} parent=11 // pred_region
          _
        $region20: #{tpu_custom_call.1} parent=11 // pred_fallthru
          _
      $region12: #{tpu_custom_call.1} parent=5 // pred_fallthru
        _
      %p127 = scmp.lt.s32.totalorder %s12, 4
      // Predicated region
      $region21: #{tpu_custom_call.1} parent=5 // pred_check
        %p128 = pneg %p127
      $region22: #{tpu_custom_call.1} parent=5 // pred_check_branch
        %130 = sbr.rel (%p128) target = $region24
      $region23: #{tpu_custom_call.1} parent=5 // pred_region
        // Predicated region
        $region25: #{tpu_custom_call.1} parent=23 // pred_check
          %p131 = pneg %p32
        $region26: #{tpu_custom_call.1} parent=23 // pred_check_branch
          %133 = sbr.rel (%p131) target = $region28
        $region27: #{tpu_custom_call.1} parent=23 // pred_region
          %s134 = smul.u32 8, %s12
          %p135 = scmp.lt.s32.totalorder %s134, 31
          %s136 = scalar_select %p135, %s134, 31
          %s137 = smul.addr %s136, 8
          %s138 = scalar_lea.vmem %s0, %s137
          %s139 = smul.u32 8, %s12
        $region28: #{tpu_custom_call.1} parent=23 // pred_fallthru
          _
      $region24: #{tpu_custom_call.1} parent=5 // pred_fallthru
        _
      %p140 = scmp.le.s32.totalorder 1, %s12
      %p141 = scmp.lt.s32.totalorder %s12, 5
      %p142 = pnand %p140, %p141
      %p143 = pneg %p142
      // Predicated region
      $region29: #{tpu_custom_call.1} parent=5 // pred_check
        _
      $region30: #{tpu_custom_call.1} parent=5 // pred_check_branch
        %145 = sbr.rel (%p142) target = $region32
      $region31: #{tpu_custom_call.1} parent=5 // pred_region
        %s146 = ssub.s32 %s12, 1
        %s147 = smul.u32 8, %s17
        %p148 = scmp.lt.s32.totalorder %s147, 31
        %s149 = scalar_select %p148, %s147, 31
        %s150 = smul.addr %s149, 8
        %s151 = scalar_lea.vmem %s0, %s150
        %p152 = pneg %p38
        %p153 = pneg %p35
        %p154 = pneg %p59
        %p155 = pneg %p56
        %p156 = pneg %p80
        %p157 = pneg %p77
        %p158 = pneg %p106
        %p159 = pneg %p103
        %s160 = sand.u32 %s93, 1
        %s161 = scalar_lea.sflag [#allocation3], %s160
        %s162 = sand.u32 %s93, 1
        %s163 = smul.addr %s162, 64
        %s164 = scalar_lea.vmem [#allocation2], %s163
        %s165 = smul.u32 8, %s17
        %p166 = scmp.lt.s32.totalorder %s165, 31
        %s167 = scalar_select %p166, %s165, 31
        %s168 = smul.addr %s167, 8
        %s169 = scalar_lea.vmem %s0, %s168
        %s170 = smul.u32 8, %s17
        %s171 = smul.u32 8, %s17
        %v172 = vld [vmem:[%s169] sm:$0xff]
        %v173 = vld [vmem:[%s169 + $0x8] sm:$0xff]
        %v174 = vld [vmem:[%s169 + $0x10] sm:$0xff]
        %v175 = vld [vmem:[%s169 + $0x18] sm:$0xff]
        %v176 = vld [vmem:[%s169 + $0x20] sm:$0xff]
        %v177 = vld [vmem:[%s169 + $0x28] sm:$0xff]
        %v178 = vld [vmem:[%s169 + $0x30] sm:$0xff]
        %v179 = vld [vmem:[%s169 + $0x38] sm:$0xff]
        %v180 = vld [vmem:[%s1] sm:$0xff]
        %v181 = vld [vmem:[%s1 + $0x8] sm:$0xff]
        %v182 = vld [vmem:[%s1 + $0x10] sm:$0xff]
        %v183 = vld [vmem:[%s1 + $0x18] sm:$0xff]
        %v184 = vld [vmem:[%s1 + $0x20] sm:$0xff]
        %v185 = vld [vmem:[%s1 + $0x28] sm:$0xff]
        %v186 = vld [vmem:[%s1 + $0x30] sm:$0xff]
        %v187 = vld [vmem:[%s1 + $0x38] sm:$0xff]
        %v188 = vld [vmem:[%s1 + $0x40] sm:$0xff]
        %v189 = vld [vmem:[%s1 + $0x48] sm:$0xff]
        %v190 = vld [vmem:[%s1 + $0x50] sm:$0xff]
        %v191 = vld [vmem:[%s1 + $0x58] sm:$0xff]
        %v192 = vld [vmem:[%s1 + $0x60] sm:$0xff]
        %v193 = vld [vmem:[%s1 + $0x68] sm:$0xff]
        %v194 = vld [vmem:[%s1 + $0x70] sm:$0xff]
        %v195 = vld [vmem:[%s1 + $0x78] sm:$0xff]
        %v196 = vld [vmem:[%s2] sm:$0x1]
        %v198 = vperm.slane %v196, 0
        %vm200 = vcmask 261120
        %v202 = vsel %vm200, %v172, 0
        %v205 = vsel %vm200, %v173, 0
        %v208 = vsel %vm200, %v174, 0
        %v211 = vsel %vm200, %v175, 0
        %v214 = vsel %vm200, %v176, 0
        %v217 = vsel %vm200, %v177, 0
        %v220 = vsel %vm200, %v178, 0
        %v223 = vsel %vm200, %v179, 0
        %v226 = vsel %vm200, %v180, 0
        %v229 = vsel %vm200, %v181, 0
        %v232 = vsel %vm200, %v182, 0
        %v235 = vsel %vm200, %v183, 0
        %v238 = vsel %vm200, %v184, 0
        %v241 = vsel %vm200, %v185, 0
        %v244 = vsel %vm200, %v186, 0
        %v247 = vsel %vm200, %v187, 0
        %v250 = vsel %vm200, %v188, 0
        %v253 = vsel %vm200, %v189, 0
        %v256 = vsel %vm200, %v190, 0
        %v259 = vsel %vm200, %v191, 0
        %v262 = vsel %vm200, %v192, 0
        %v265 = vsel %vm200, %v193, 0
        %v268 = vsel %vm200, %v194, 0
        %v271 = vsel %vm200, %v195, 0
        %273 = vmatpush.xpose.msra.mxu0 %v271
        %274 = vmatpush.xpose.msra.mxu0 %v268
        %275 = vmatpush.xpose.msra.mxu0 %v265
        %276 = vmatpush.xpose.msra.mxu0 %v262
        %277 = vmatpush.xpose.msra.mxu0 %v259
        %278 = vmatpush.xpose.msra.mxu0 %v256
        %279 = vmatpush.xpose.msra.mxu0 %v253
        %280 = vmatpush.xpose.msra.mxu0 %v250
        %281 = vmatpush.xpose.msra.mxu0 %v247
        %282 = vmatpush.xpose.msra.mxu0 %v244
        %283 = vmatpush.xpose.msra.mxu0 %v241
        %284 = vmatpush.xpose.msra.mxu0 %v238
        %285 = vmatpush.xpose.msra.mxu0 %v235
        %286 = vmatpush.xpose.msra.mxu0 %v232
        %287 = vmatpush.xpose.msra.mxu0 %v229
        %288 = vmatpush.xpose.msra.mxu0 %v226
        %289 = vmatmul.f32.gmra.mxu0 %v202
        %v290 = vpop.f32.mrf.mxu0
        %v291 = vadd.f32 %v198, %v290
        %292 = vmatmul.f32.gmra.mxu0 %v205
        %v293 = vpop.f32.mrf.mxu0
        %v294 = vadd.f32 %v198, %v293
        %295 = vmatmul.f32.gmra.mxu0 %v208
        %v296 = vpop.f32.mrf.mxu0
        %v297 = vadd.f32 %v198, %v296
        %298 = vmatmul.f32.gmra.mxu0 %v211
        %v299 = vpop.f32.mrf.mxu0
        %v300 = vadd.f32 %v198, %v299
        %301 = vmatmul.f32.gmra.mxu0 %v214
        %v302 = vpop.f32.mrf.mxu0
        %v303 = vadd.f32 %v198, %v302
        %304 = vmatmul.f32.gmra.mxu0 %v217
        %v305 = vpop.f32.mrf.mxu0
        %v306 = vadd.f32 %v198, %v305
        %307 = vmatmul.f32.gmra.mxu0 %v220
        %v308 = vpop.f32.mrf.mxu0
        %v309 = vadd.f32 %v198, %v308
        %310 = vmatmul.f32.gmra.mxu0 %v223
        %v311 = vpop.f32.mrf.mxu0
        %v312 = vadd.f32 %v198, %v311
        %313 = vdwg.mxu0
        %314 = vst [vmem:[%s164] sm:$0xff] %v291
        %315 = vst [vmem:[%s164 + $0x8] sm:$0xff] %v294
        %316 = vst [vmem:[%s164 + $0x10] sm:$0xff] %v297
        %317 = vst [vmem:[%s164 + $0x18] sm:$0xff] %v300
        %318 = vst [vmem:[%s164 + $0x20] sm:$0xff] %v303
        %319 = vst [vmem:[%s164 + $0x28] sm:$0xff] %v306
        %320 = vst [vmem:[%s164 + $0x30] sm:$0xff] %v309
        %321 = vst [vmem:[%s164 + $0x38] sm:$0xff] %v312
        %s322 = sand.u32 %s93, 1
        %s323 = scalar_lea.sflag [#allocation3], %s322
        %s324 = sand.u32 %s93, 1
        %s325 = smul.addr %s324, 64
        %s326 = scalar_lea.vmem [#allocation2], %s325
        // Predicated region
        $region33: #{tpu_custom_call.1} parent=31 // pred_check
          %p327 = pneg %p103
        $region34: #{tpu_custom_call.1} parent=31 // pred_check_branch
          %329 = sbr.rel (%p327) target = $region36
        $region35: #{tpu_custom_call.1} parent=31 // pred_region
          %s330 = smul.u32 8, %s17
          %332 = vsyncadd %s323, 0
          %s333 = smul.addr %s330, 8
          %s334 = scalar_lea.hbm %s3, %s333
          %s335 = sshll.u32 %s326, 4
          %s336 = int_to_ptr.vmem [resolvable:$true] %s335
          %s337 = sshll.u32 %s334, 4
          %s338 = int_to_ptr.hbm [resolvable:$true] %s337
          %343 = dma.vmem_to_hbm [thread:$0]  %s336, 1024, %s338, %s323, 128, 128, 8
        $region36: #{tpu_custom_call.1} parent=31 // pred_fallthru
          _
      $region32: #{tpu_custom_call.1} parent=5 // pred_fallthru
        _
      %p344 = scmp.le.s32.totalorder 2, %s12
      // Predicated region
      $region37: #{tpu_custom_call.1} parent=5 // pred_check
        %p345 = pneg %p344
      $region38: #{tpu_custom_call.1} parent=5 // pred_check_branch
        %347 = sbr.rel (%p345) target = $region40
      $region39: #{tpu_custom_call.1} parent=5 // pred_region
        %s348 = ssub.s32 %s12, 2
        // Predicated region
        $region41: #{tpu_custom_call.1} parent=39 // pred_check
          %p349 = pneg %p109
        $region42: #{tpu_custom_call.1} parent=39 // pred_check_branch
          %351 = sbr.rel (%p349) target = $region44
        $region43: #{tpu_custom_call.1} parent=39 // pred_region
          %s352 = sand.u32 %s94, 1
          %s353 = scalar_lea.sflag [#allocation3], %s352
          %s354 = sand.u32 %s94, 1
          %s355 = smul.addr %s354, 64
          %s356 = scalar_lea.vmem [#allocation2], %s355
          %358 = dma.done %s353, 1024
        $region44: #{tpu_custom_call.1} parent=39 // pred_fallthru
          _
      $region40: #{tpu_custom_call.1} parent=5 // pred_fallthru
        _
    $region6: #{tpu_custom_call.1} parent=1 // loop_footer
      %s16 = sadd.s32 1, %s12
    $region7: #{tpu_custom_call.1} parent=1 // loop_footer_branch
      %11 = sbr.rel target = $region3
    $region8: #{tpu_custom_call.1} parent=1 // loop_exit
      _
    %359 = vsyncpa [#allocation3], 1
    %s360 = scalar_lea.sflag [#allocation3], 1
    %361 = vsyncpa %s360, 1

</llo_original>
